<compile_context>
chip_gen: v6e
topology: v6e:2x2x1
jax: 0.10.0
libtpu: 0.0.40
codegen_flags: <defaults>
</compile_context>

<pallas_src>
import jax
import jax.numpy as jnp
from jax import lax
from jax.experimental import pallas as pl
from jax.experimental.pallas import tpu as pltpu


def _round_up(x, m):
    return ((x + m - 1) // m) * m


def _make_conv_block_kernel(W, HW, Cp, C1p, Wx, L1, L2c, L2, with_pool):
    """Fused conv3x3+ReLU -> conv3x3+ReLU -> (optional fused 2x2/2 maxpool).

    All planes use flat spatial addressing p = h*W + w on the lane axis, so a
    tap (kh, kw) is a static lane shift by kh*W + kw.  Plane widths cascade
    (Wx >= L1 + 2W+2 >= L2c + 2*(2W+2) >= L2 + (W+1) + 2*(2W+2)) so every
    shifted window is a plain in-bounds static slice; positions outside the
    valid conv region hold finite garbage that is never read by downstream
    valid positions and is discarded by the wrapper.
    """
    offs = tuple(kh * W + kw for kh in range(3) for kw in range(3))

    def conv_relu(plane, width, wmat, bias):
        # plane: (cin, width + 2W + 2); wmat: (cout, 9*cin); bias: (cout, 1)
        # im2col: stack the 9 shifted slices on the sublane axis (tap-major,
        # matching pack_w) -> one MXU matmul with contraction depth 9*cin.
        cols = jnp.concatenate([plane[:, d:d + width] for d in offs], axis=0)
        acc = jnp.dot(wmat, cols, preferred_element_type=jnp.float32)
        return jnp.maximum(acc + bias, 0.0)

    def kernel(x_ref, w1_ref, b1_ref, w2_ref, b2_ref, *out_refs):
        x0 = x_ref[0]                                   # (Cp, HW) dense DMA
        # Zero lane tail built in VMEM (no padded HBM slab / extra pre-pass).
        xp = jnp.concatenate(
            [x0, jnp.zeros((Cp, Wx - HW), x0.dtype)], axis=1)      # (Cp, Wx)

        y1 = conv_relu(xp, L1, w1_ref[...], b1_ref[...])           # (C1p, L1)
        y2 = conv_relu(y1, L2c, w2_ref[...], b2_ref[...])          # (C1p, L2c)

        out_refs[0][0] = y2[:, :L2].astype(out_refs[0].dtype)      # lane-dense

        if with_pool:
            # Fused 2x2 window max: max over lane shifts {0, 1, W, W+1}.
            # Valid pooled values sit at even (h, w); wrapper strides them out.
            pool_ref = out_refs[1]
            m = jnp.maximum(
                jnp.maximum(y2[:, 0:L2], y2[:, 1:1 + L2]),
                jnp.maximum(y2[:, W:W + L2], y2[:, W + 1:W + 1 + L2]))
            pool_ref[0] = m.astype(pool_ref.dtype)

    return kernel


def conv_block_forward(x_nchw, params, maxpool=True):
    """ConvBlock forward. x_nchw: (N, Cin, H, W); params in PyTorch shapes."""
    w1, b1, w2, b2 = params            # (C1,Cin,3,3), (C1,), (C1,C1,3,3), (C1,)
    N, Cin, H, W = x_nchw.shape
    C1 = w1.shape[0]
    Ho, Wo = H - 4, W - 4              # after two valid 3x3 convs
    Hp, Wp = Ho // 2, Wo // 2          # floor mode, matches nn.MaxPool2d
    HW = H * W
    dtype = x_nchw.dtype

    # Padded channel counts and cascaded plane widths.
    Cp = _round_up(Cin, 8)
    C1p = _round_up(C1, 8)
    S = 2 * W + 2                      # largest 3x3 tap shift (kh*W + kw)
    L2 = _round_up(Ho * W, 128)        # stored plane width (lane aligned)
    L2c = L2 + (W + 1 if maxpool else 0)   # y2 computed width (pool shifts)
    L1 = L2c + S                       # y1 computed width (conv2 shifts)
    Wx = L1 + S                        # in-kernel padded input plane width

    # ---- layout plumbing (plain JAX, outside the kernel) -------------------
    x_flat = x_nchw.reshape(N, Cin, HW)
    if Cp != Cin:                      # channel pad only (no-op when Cin%8==0)
        x_flat = jnp.pad(x_flat, ((0, 0), (0, Cp - Cin), (0, 0)))

    def pack_w(w, cout_p, cin_p):
        # (cout, cin, 3, 3) -> (cout_p, 9*cin_p), col = (kh*3+kw)*cin_p + ci
        cout, cin = w.shape[0], w.shape[1]
        wp = jnp.pad(w, ((0, cout_p - cout), (0, cin_p - cin), (0, 0), (0, 0)))
        return (jnp.transpose(wp, (0, 2, 3, 1))
                .reshape(cout_p, 9 * cin_p).astype(jnp.float32))

    w1k = pack_w(w1, C1p, Cp)          # (C1p, 9*Cp)
    w2k = pack_w(w2, C1p, C1p)         # (C1p, 9*C1p)
    b1k = jnp.pad(b1, (0, C1p - C1)).reshape(C1p, 1).astype(jnp.float32)
    b2k = jnp.pad(b2, (0, C1p - C1)).reshape(C1p, 1).astype(jnp.float32)

    kernel = _make_conv_block_kernel(W, HW, Cp, C1p, Wx, L1, L2c, L2, maxpool)

    plane = jax.ShapeDtypeStruct((N, C1p, L2), dtype)
    out_shape = (plane, plane) if maxpool else (plane,)
    out_spec = pl.BlockSpec((1, C1p, L2), lambda n: (n, 0, 0))
    out_specs = (out_spec, out_spec) if maxpool else (out_spec,)

    outs = pl.pallas_call(
        kernel,
        out_shape=out_shape,
        grid=(N,),
        in_specs=[
            pl.BlockSpec((1, Cp, HW), lambda n: (n, 0, 0)),   # dense input DMA
            pl.BlockSpec((C1p, 9 * Cp), lambda n: (0, 0)),
            pl.BlockSpec((C1p, 1), lambda n: (0, 0)),
            pl.BlockSpec((C1p, 9 * C1p), lambda n: (0, 0)),
            pl.BlockSpec((C1p, 1), lambda n: (0, 0)),
        ],
        out_specs=out_specs,
        compiler_params=pltpu.CompilerParams(
            dimension_semantics=("parallel",)),
    )(x_flat, w1k, b1k, w2k, b2k)

    # Valid-region extraction / de-padding (pure layout, no compute).
    out_conv2 = (outs[0][:, :C1, :Ho * W]
                 .reshape(N, C1, Ho, W)[:, :, :, :Wo])
    if not maxpool:
        return out_conv2

    pooled = (outs[1][:, :C1, :2 * Hp * W]
              .reshape(N, C1, 2 * Hp, W)[:, :, ::2, 0:2 * Wp:2])
    return pooled, out_conv2


def _reference_forward(x, w1, b1, w2, b2):
    """Pure-JAX reference with PyTorch (NCHW / OIHW) conventions."""
    dn = ("NCHW", "OIHW", "NCHW")
    y = lax.conv_general_dilated(x, w1, (1, 1), "VALID", dimension_numbers=dn,
                                 precision=lax.Precision.HIGHEST)
    y = jnp.maximum(y + b1[None, :, None, None], 0.0)
    y = lax.conv_general_dilated(y, w2, (1, 1), "VALID", dimension_numbers=dn,
                                 precision=lax.Precision.HIGHEST)
    y2 = jnp.maximum(y + b2[None, :, None, None], 0.0)
    p = lax.reduce_window(y2, -jnp.inf, lax.max, (1, 1, 2, 2), (1, 1, 2, 2),
                          "VALID")
    return p, y2


if __name__ == "__main__":
    key = jax.random.PRNGKey(0)
    k1, k2, k3, k4, k5 = jax.random.split(key, 5)

    N, Cin, H, W = 2, 4, 16, 16
    C1 = 8  # out_channels

    # Snap test data onto the bf16 grid: the kernel runs the MXU at DEFAULT
    # precision (bf16 operands), so with bf16-exact inputs the only residual
    # error vs. the f32 reference is the bf16 re-round of the conv1
    # activations feeding conv2 (well under the tolerances below).
    def bf16_snap(a):
        return a.astype(jnp.bfloat16).astype(jnp.float32)

    x = bf16_snap(jax.random.normal(k1, (N, Cin, H, W), dtype=jnp.float32))
    w1 = bf16_snap(0.1 * jax.random.normal(k2, (C1, Cin, 3, 3), jnp.float32))
    b1 = bf16_snap(0.1 * jax.random.normal(k3, (C1,), jnp.float32))
    w2 = bf16_snap(0.1 * jax.random.normal(k4, (C1, C1, 3, 3), jnp.float32))
    b2 = bf16_snap(0.1 * jax.random.normal(k5, (C1,), jnp.float32))
    params = (w1, b1, w2, b2)

    # maxpool=True branch: returns (pooled, out_conv2)
    pooled, out_conv2 = conv_block_forward(x, params, maxpool=True)
    jax.block_until_ready((pooled, out_conv2))

    # maxpool=False branch: returns out_conv2 only
    out_conv2_only = conv_block_forward(x, params, maxpool=False)
    jax.block_until_ready(out_conv2_only)

    # Check against a pure-JAX reference of the PyTorch module.
    p_ref, y2_ref = _reference_forward(x, w1, b1, w2, b2)
    assert out_conv2.shape == (N, C1, H - 4, W - 4)
    assert pooled.shape == (N, C1, (H - 4) // 2, (W - 4) // 2)
    assert jnp.allclose(out_conv2, y2_ref, atol=1e-2, rtol=1e-2)
    assert jnp.allclose(out_conv2_only, y2_ref, atol=1e-2, rtol=1e-2)
    assert jnp.allclose(pooled, p_ref, atol=1e-2, rtol=1e-2)

    print("KERNEL_OK")
</pallas_src>

<mosaic_0001>
module attributes {stable_mosaic.version = 11 : i64} {
  func.func @kernel(%arg0: i32, %arg1: memref<1x8x256xf32, #tpu.memory_space<vmem>>, %arg2: memref<8x72xf32, #tpu.memory_space<vmem>>, %arg3: memref<8x1xf32, #tpu.memory_space<vmem>>, %arg4: memref<8x72xf32, #tpu.memory_space<vmem>>, %arg5: memref<8x1xf32, #tpu.memory_space<vmem>>, %arg6: memref<1x8x256xf32, #tpu.memory_space<vmem>>, %arg7: memref<1x8x256xf32, #tpu.memory_space<vmem>>) attributes {dimension_semantics = [#tpu.dimension_semantics<parallel>], iteration_bounds = array<i64: 2>, scalar_prefetch = 0 : i64, scratch_operands = 0 : i64, tpu.core_type = #tpu.core_type<tc>, window_params = [{transform_indices = @transform_0, window_bounds = array<i64: 1, 8, 256>}, {pipeline_mode = #tpu.pipeline_mode<synchronous>, transform_indices = @transform_1, window_bounds = array<i64: 8, 72>}, {pipeline_mode = #tpu.pipeline_mode<synchronous>, transform_indices = @transform_2, window_bounds = array<i64: 8, 1>}, {pipeline_mode = #tpu.pipeline_mode<synchronous>, transform_indices = @transform_3, window_bounds = array<i64: 8, 72>}, {pipeline_mode = #tpu.pipeline_mode<synchronous>, transform_indices = @transform_4, window_bounds = array<i64: 8, 1>}, {transform_indices = @transform_5, window_bounds = array<i64: 1, 8, 256>}, {transform_indices = @transform_6, window_bounds = array<i64: 1, 8, 256>}]} {
    %c0 = arith.constant 0 : index
    %c0_0 = arith.constant 0 : index
    %c0_1 = arith.constant 0 : index
    %0 = vector.load %arg1[%c0, %c0_0, %c0_1] : memref<1x8x256xf32, #tpu.memory_space<vmem>>, vector<1x8x256xf32>
    %1 = vector.shape_cast %0 : vector<1x8x256xf32> to vector<8x256xf32>
    %cst = arith.constant 0.000000e+00 : f32
    %2 = vector.broadcast %cst : f32 to vector<8x85xf32>
    %3 = tpu.concatenate %1, %2 in 1 : vector<8x256xf32>, vector<8x85xf32> -> vector<8x341xf32>
    %c0_2 = arith.constant 0 : index
    %c0_3 = arith.constant 0 : index
    %4 = vector.load %arg2[%c0_2, %c0_3] : memref<8x72xf32, #tpu.memory_space<vmem>>, vector<8x72xf32>
    %c0_4 = arith.constant 0 : index
    %c0_5 = arith.constant 0 : index
    %5 = vector.load %arg3[%c0_4, %c0_5] : memref<8x1xf32, #tpu.memory_space<vmem>>, vector<8x1xf32>
    %6 = vector.extract_strided_slice %3 {offsets = [0, 0], sizes = [8, 307], strides = [1, 1]} : vector<8x341xf32> to vector<8x307xf32>
    %7 = vector.extract_strided_slice %3 {offsets = [0, 1], sizes = [8, 307], strides = [1, 1]} : vector<8x341xf32> to vector<8x307xf32>
    %8 = vector.extract_strided_slice %3 {offsets = [0, 2], sizes = [8, 307], strides = [1, 1]} : vector<8x341xf32> to vector<8x307xf32>
    %9 = vector.extract_strided_slice %3 {offsets = [0, 16], sizes = [8, 307], strides = [1, 1]} : vector<8x341xf32> to vector<8x307xf32>
    %10 = vector.extract_strided_slice %3 {offsets = [0, 17], sizes = [8, 307], strides = [1, 1]} : vector<8x341xf32> to vector<8x307xf32>
    %11 = vector.extract_strided_slice %3 {offsets = [0, 18], sizes = [8, 307], strides = [1, 1]} : vector<8x341xf32> to vector<8x307xf32>
    %12 = vector.extract_strided_slice %3 {offsets = [0, 32], sizes = [8, 307], strides = [1, 1]} : vector<8x341xf32> to vector<8x307xf32>
    %13 = vector.extract_strided_slice %3 {offsets = [0, 33], sizes = [8, 307], strides = [1, 1]} : vector<8x341xf32> to vector<8x307xf32>
    %14 = vector.extract_strided_slice %3 {offsets = [0, 34], sizes = [8, 307], strides = [1, 1]} : vector<8x341xf32> to vector<8x307xf32>
    %15 = tpu.concatenate %6, %7, %8, %9, %10, %11, %12, %13, %14 in 0 : vector<8x307xf32>, vector<8x307xf32>, vector<8x307xf32>, vector<8x307xf32>, vector<8x307xf32>, vector<8x307xf32>, vector<8x307xf32>, vector<8x307xf32>, vector<8x307xf32> -> vector<72x307xf32>
    %cst_6 = arith.constant dense<0.000000e+00> : vector<8x307xf32>
    %16 = tpu.matmul %4, %15, %cst_6 {dimension_numbers = #tpu.dot_dimension_numbers<[1], [0], [0], [1], [0, 0, 1, 1], [], []>} : vector<8x72xf32>, vector<72x307xf32>, vector<8x307xf32> -> vector<8x307xf32>
    %17 = vector.broadcast %5 : vector<8x1xf32> to vector<8x307xf32>
    %18 = arith.addf %16, %17 : vector<8x307xf32>
    %cst_7 = arith.constant 0.000000e+00 : f32
    %19 = vector.broadcast %cst_7 : f32 to vector<8x307xf32>
    %20 = arith.maximumf %18, %19 : vector<8x307xf32>
    %c0_8 = arith.constant 0 : index
    %c0_9 = arith.constant 0 : index
    %21 = vector.load %arg4[%c0_8, %c0_9] : memref<8x72xf32, #tpu.memory_space<vmem>>, vector<8x72xf32>
    %c0_10 = arith.constant 0 : index
    %c0_11 = arith.constant 0 : index
    %22 = vector.load %arg5[%c0_10, %c0_11] : memref<8x1xf32, #tpu.memory_space<vmem>>, vector<8x1xf32>
    %23 = vector.extract_strided_slice %20 {offsets = [0, 0], sizes = [8, 273], strides = [1, 1]} : vector<8x307xf32> to vector<8x273xf32>
    %24 = vector.extract_strided_slice %20 {offsets = [0, 1], sizes = [8, 273], strides = [1, 1]} : vector<8x307xf32> to vector<8x273xf32>
    %25 = vector.extract_strided_slice %20 {offsets = [0, 2], sizes = [8, 273], strides = [1, 1]} : vector<8x307xf32> to vector<8x273xf32>
    %26 = vector.extract_strided_slice %20 {offsets = [0, 16], sizes = [8, 273], strides = [1, 1]} : vector<8x307xf32> to vector<8x273xf32>
    %27 = vector.extract_strided_slice %20 {offsets = [0, 17], sizes = [8, 273], strides = [1, 1]} : vector<8x307xf32> to vector<8x273xf32>
    %28 = vector.extract_strided_slice %20 {offsets = [0, 18], sizes = [8, 273], strides = [1, 1]} : vector<8x307xf32> to vector<8x273xf32>
    %29 = vector.extract_strided_slice %20 {offsets = [0, 32], sizes = [8, 273], strides = [1, 1]} : vector<8x307xf32> to vector<8x273xf32>
    %30 = vector.extract_strided_slice %20 {offsets = [0, 33], sizes = [8, 273], strides = [1, 1]} : vector<8x307xf32> to vector<8x273xf32>
    %31 = vector.extract_strided_slice %20 {offsets = [0, 34], sizes = [8, 273], strides = [1, 1]} : vector<8x307xf32> to vector<8x273xf32>
    %32 = tpu.concatenate %23, %24, %25, %26, %27, %28, %29, %30, %31 in 0 : vector<8x273xf32>, vector<8x273xf32>, vector<8x273xf32>, vector<8x273xf32>, vector<8x273xf32>, vector<8x273xf32>, vector<8x273xf32>, vector<8x273xf32>, vector<8x273xf32> -> vector<72x273xf32>
    %cst_12 = arith.constant dense<0.000000e+00> : vector<8x273xf32>
    %33 = tpu.matmul %21, %32, %cst_12 {dimension_numbers = #tpu.dot_dimension_numbers<[1], [0], [0], [1], [0, 0, 1, 1], [], []>} : vector<8x72xf32>, vector<72x273xf32>, vector<8x273xf32> -> vector<8x273xf32>
    %34 = vector.broadcast %22 : vector<8x1xf32> to vector<8x273xf32>
    %35 = arith.addf %33, %34 : vector<8x273xf32>
    %cst_13 = arith.constant 0.000000e+00 : f32
    %36 = vector.broadcast %cst_13 : f32 to vector<8x273xf32>
    %37 = arith.maximumf %35, %36 : vector<8x273xf32>
    %38 = vector.extract_strided_slice %37 {offsets = [0, 0], sizes = [8, 256], strides = [1, 1]} : vector<8x273xf32> to vector<8x256xf32>
    %c0_14 = arith.constant 0 : index
    %c0_15 = arith.constant 0 : index
    %c0_16 = arith.constant 0 : index
    %39 = vector.load %arg6[%c0_14, %c0_15, %c0_16] : memref<1x8x256xf32, #tpu.memory_space<vmem>>, vector<1x8x256xf32>
    %40 = vector.shape_cast %39 : vector<1x8x256xf32> to vector<8x256xf32>
    %41 = vector.shape_cast %38 : vector<8x256xf32> to vector<1x8x256xf32>
    tpu.vector_store %arg6[%c0_14, %c0_15, %c0_16], %41 {strides = array<i32>} : memref<1x8x256xf32, #tpu.memory_space<vmem>>, vector<1x8x256xf32>,
    %42 = vector.extract_strided_slice %37 {offsets = [0, 0], sizes = [8, 256], strides = [1, 1]} : vector<8x273xf32> to vector<8x256xf32>
    %43 = vector.extract_strided_slice %37 {offsets = [0, 1], sizes = [8, 256], strides = [1, 1]} : vector<8x273xf32> to vector<8x256xf32>
    %44 = arith.maximumf %42, %43 : vector<8x256xf32>
    %45 = vector.extract_strided_slice %37 {offsets = [0, 16], sizes = [8, 256], strides = [1, 1]} : vector<8x273xf32> to vector<8x256xf32>
    %46 = vector.extract_strided_slice %37 {offsets = [0, 17], sizes = [8, 256], strides = [1, 1]} : vector<8x273xf32> to vector<8x256xf32>
    %47 = arith.maximumf %45, %46 : vector<8x256xf32>
    %48 = arith.maximumf %44, %47 : vector<8x256xf32>
    %c0_17 = arith.constant 0 : index
    %c0_18 = arith.constant 0 : index
    %c0_19 = arith.constant 0 : index
    %49 = vector.load %arg7[%c0_17, %c0_18, %c0_19] : memref<1x8x256xf32, #tpu.memory_space<vmem>>, vector<1x8x256xf32>
    %50 = vector.shape_cast %49 : vector<1x8x256xf32> to vector<8x256xf32>
    %51 = vector.shape_cast %48 : vector<8x256xf32> to vector<1x8x256xf32>
    tpu.vector_store %arg7[%c0_17, %c0_18, %c0_19], %51 {strides = array<i32>} : memref<1x8x256xf32, #tpu.memory_space<vmem>>, vector<1x8x256xf32>,
    return
  }
  func.func @transform_0(%arg0: i32) -> (i32, i32, i32) {
    %c0_i32 = arith.constant 0 : i32
    %c0_i32_0 = arith.constant 0 : i32
    %c0_i32_1 = arith.constant 0 : i32
    return %arg0, %c0_i32, %c0_i32_0 : i32, i32, i32
  }
  func.func @transform_1(%arg0: i32) -> (i32, i32) {
    %c0_i32 = arith.constant 0 : i32
    %c0_i32_0 = arith.constant 0 : i32
    %c0_i32_1 = arith.constant 0 : i32
    return %c0_i32, %c0_i32_0 : i32, i32
  }
  func.func @transform_2(%arg0: i32) -> (i32, i32) {
    %c0_i32 = arith.constant 0 : i32
    %c0_i32_0 = arith.constant 0 : i32
    %c0_i32_1 = arith.constant 0 : i32
    return %c0_i32, %c0_i32_0 : i32, i32
  }
  func.func @transform_3(%arg0: i32) -> (i32, i32) {
    %c0_i32 = arith.constant 0 : i32
    %c0_i32_0 = arith.constant 0 : i32
    %c0_i32_1 = arith.constant 0 : i32
    return %c0_i32, %c0_i32_0 : i32, i32
  }
  func.func @transform_4(%arg0: i32) -> (i32, i32) {
    %c0_i32 = arith.constant 0 : i32
    %c0_i32_0 = arith.constant 0 : i32
    %c0_i32_1 = arith.constant 0 : i32
    return %c0_i32, %c0_i32_0 : i32, i32
  }
  func.func @transform_5(%arg0: i32) -> (i32, i32, i32) {
    %c0_i32 = arith.constant 0 : i32
    %c0_i32_0 = arith.constant 0 : i32
    %c0_i32_1 = arith.constant 0 : i32
    return %arg0, %c0_i32, %c0_i32_0 : i32, i32, i32
  }
  func.func @transform_6(%arg0: i32) -> (i32, i32, i32) {
    %c0_i32 = arith.constant 0 : i32
    %c0_i32_0 = arith.constant 0 : i32
    %c0_i32_1 = arith.constant 0 : i32
    return %arg0, %c0_i32, %c0_i32_0 : i32, i32, i32
  }
}

</mosaic_0001>

<llo_original>
// kernel: tpu_custom_call.1
$region0: #{tpu_custom_call.1}
  #allocation0 [shape = 'u32[]', space=smem, size = 0x4, offset = 0x4, fixed_abs, tag = 'smem constant byte address 0x4 - core index']
  #allocation1 [shape = 'u32[144,128]{1,0:T(1,128)}', space=vmem, size = 0x12000, scoped, tag = 'internal scratch']
  %s0 = inlined_call_operand.hbm [shape: f32[2,8,256], index: 0, kind: input, shape index: {}]
  %s1 = inlined_call_operand.vmem [shape: f32[8,72], index: 1, kind: input, shape index: {}]
  %s2 = inlined_call_operand.vmem [shape: f32[8,1], index: 2, kind: input, shape index: {}]
  %s3 = inlined_call_operand.vmem [shape: f32[8,72], index: 3, kind: input, shape index: {}]
  %s4 = inlined_call_operand.vmem [shape: f32[8,1], index: 4, kind: input, shape index: {}]
  %s5 = inlined_call_operand.hbm [shape: f32[2,8,256], index: 5, kind: output, shape index: {0}]
  %s6 = inlined_call_operand.hbm [shape: f32[2,8,256], index: 6, kind: output, shape index: {1}]
  %7 = xla_tuple %s5, %s6
  %s8 = sld [smem:[#allocation0]]
  $region65: #{tpu_custom_call.1} parent=0
    _
  %s10 = ssub.s32 1, %s8
  %s11 = scalar_select 0, %s10, %s8
  $region1: #{tpu_custom_call.1} parent=0
    #allocation2 [shape = 'u8[16384]{0}', space=vmem, size = 0x4000, scoped, tag = 'input window, operand 0']
    #allocation3 [shape = 's32[2]{0}', space=sflag, size = 0x8, scoped, tag = 'scoped memory for tpu_custom_call.1']
    #allocation4 [shape = 's32[2]{0}', space=sflag, size = 0x8, scoped, tag = 'scoped memory for tpu_custom_call.1']
    #allocation5 [shape = 'u8[16384]{0}', space=vmem, size = 0x4000, scoped, tag = 'output window, operand 0']
    #allocation6 [shape = 'u8[16384]{0}', space=vmem, size = 0x4000, scoped, tag = 'output window, operand 1']
    #allocation7 [shape = 's32[2]{0}', space=sflag, size = 0x8, scoped, tag = 'scoped memory for tpu_custom_call.1']
    %12 = vsyncpa [#allocation3], 0
    %s13 = scalar_lea.sflag [#allocation3], 1
    %14 = vsyncpa %s13, 0
    %15 = vsyncpa [#allocation4], 0
    %s16 = scalar_lea.sflag [#allocation4], 1
    %17 = vsyncpa %s16, 0
    %18 = vsyncpa [#allocation7], 0
    %s19 = scalar_lea.sflag [#allocation7], 1
    %20 = vsyncpa %s19, 0
    loop: start=0, step=1, limit=4
    $region2: #{tpu_custom_call.1} parent=1 // loop_pre_header
      _
    $region3: #{tpu_custom_call.1} parent=1 // loop_header
      %s22 = sphi 0, %s26
      %p23 = scmp.ge.s32.totalorder %s22, 4
      %s32 = sphi 0, %s34
      %s35 = sphi 0, %s32
      %s36 = sphi 0, %s35
      %s52 = sphi 0, %s36
      %s56 = sphi 0, %s56
      %s58 = sphi 0, %s56
      %s59 = sphi 0, %s58
      %s73 = sphi 0, %s59
      %s77 = sphi 0, %s77
      %s79 = sphi 0, %s77
      %s80 = sphi 0, %s79
      %s94 = sphi 0, %s80
      %s98 = sphi 0, %s98
      %s100 = sphi 0, %s98
      %s101 = sphi 0, %s100
      %s115 = sphi 0, %s101
      %s119 = sphi 0, %s119
      %s121 = sphi 0, %s119
      %s122 = sphi 0, %s121
      %s136 = sphi 0, %s122
      %s142 = sphi 0, %s144
      %s145 = sphi 0, %s142
      %s146 = sphi 0, %s145
      %s162 = sphi 0, %s146
      %s168 = sphi 0, %s170
      %s171 = sphi 0, %s168
      %s172 = sphi 0, %s171
      %s188 = sphi 0, %s172
    $region4: #{tpu_custom_call.1} parent=1 // loop_header_branch
      %25 = sbr.rel (%p23) target = $region8
    $region5: #{tpu_custom_call.1} parent=1 // loop_body
      %s27 = ssub.s32 %s22, 1
      %s28 = ssub.s32 %s22, 2
      %s29 = sadd.s32 %s22, 1
      %s30 = ssub.s32 %s22, %s29
      %p31 = scmp.eq.s32.totalorder %s30, 0
      %s33 = sadd.s32 %s32, 1
      %s34 = scalar_select %p31, %s32, %s33
      %p37 = pneg %p31
      %p38 = scmp.eq.s32.totalorder %s22, 1
      %p39 = por %p37, %p38
      %p40 = scmp.ne.s32.totalorder %s32, %s35
      %p41 = scmp.eq.s32.totalorder %s22, 0
      %p42 = por %p40, %p41
      %p43 = scmp.ne.s32.totalorder %s32, %s35
      %p44 = scmp.eq.s32.totalorder %s27, 1
      %p45 = por %p43, %p44
      %p46 = scmp.ne.s32.totalorder %s35, %s36
      %p47 = scmp.eq.s32.totalorder %s27, 0
      %p48 = por %p46, %p47
      %p49 = scmp.ne.s32.totalorder %s35, %s36
      %p50 = scmp.eq.s32.totalorder %s28, 1
      %p51 = por %p49, %p50
      %p53 = scmp.ne.s32.totalorder %s36, %s52
      %p54 = scmp.eq.s32.totalorder %s28, 0
      %p55 = por %p53, %p54
      %s57 = sadd.s32 %s56, 1
      %p60 = scmp.eq.s32.totalorder %s22, 1
      %p61 = scmp.ne.s32.totalorder %s56, %s58
      %p62 = scmp.eq.s32.totalorder %s22, 0
      %p63 = por %p61, %p62
      %p64 = scmp.ne.s32.totalorder %s56, %s58
      %p65 = scmp.eq.s32.totalorder %s27, 1
      %p66 = por %p64, %p65
      %p67 = scmp.ne.s32.totalorder %s58, %s59
      %p68 = scmp.eq.s32.totalorder %s27, 0
      %p69 = por %p67, %p68
      %p70 = scmp.ne.s32.totalorder %s58, %s59
      %p71 = scmp.eq.s32.totalorder %s28, 1
      %p72 = por %p70, %p71
      %p74 = scmp.ne.s32.totalorder %s59, %s73
      %p75 = scmp.eq.s32.totalorder %s28, 0
      %p76 = por %p74, %p75
      %s78 = sadd.s32 %s77, 1
      %p81 = scmp.eq.s32.totalorder %s22, 1
      %p82 = scmp.ne.s32.totalorder %s77, %s79
      %p83 = scmp.eq.s32.totalorder %s22, 0
      %p84 = por %p82, %p83
      %p85 = scmp.ne.s32.totalorder %s77, %s79
      %p86 = scmp.eq.s32.totalorder %s27, 1
      %p87 = por %p85, %p86
      %p88 = scmp.ne.s32.totalorder %s79, %s80
      %p89 = scmp.eq.s32.totalorder %s27, 0
      %p90 = por %p88, %p89
      %p91 = scmp.ne.s32.totalorder %s79, %s80
      %p92 = scmp.eq.s32.totalorder %s28, 1
      %p93 = por %p91, %p92
      %p95 = scmp.ne.s32.totalorder %s80, %s94
      %p96 = scmp.eq.s32.totalorder %s28, 0
      %p97 = por %p95, %p96
      %s99 = sadd.s32 %s98, 1
      %p102 = scmp.eq.s32.totalorder %s22, 1
      %p103 = scmp.ne.s32.totalorder %s98, %s100
      %p104 = scmp.eq.s32.totalorder %s22, 0
      %p105 = por %p103, %p104
      %p106 = scmp.ne.s32.totalorder %s98, %s100
      %p107 = scmp.eq.s32.totalorder %s27, 1
      %p108 = por %p106, %p107
      %p109 = scmp.ne.s32.totalorder %s100, %s101
      %p110 = scmp.eq.s32.totalorder %s27, 0
      %p111 = por %p109, %p110
      %p112 = scmp.ne.s32.totalorder %s100, %s101
      %p113 = scmp.eq.s32.totalorder %s28, 1
      %p114 = por %p112, %p113
      %p116 = scmp.ne.s32.totalorder %s101, %s115
      %p117 = scmp.eq.s32.totalorder %s28, 0
      %p118 = por %p116, %p117
      %s120 = sadd.s32 %s119, 1
      %p123 = scmp.eq.s32.totalorder %s22, 1
      %p124 = scmp.ne.s32.totalorder %s119, %s121
      %p125 = scmp.eq.s32.totalorder %s22, 0
      %p126 = por %p124, %p125
      %p127 = scmp.ne.s32.totalorder %s119, %s121
      %p128 = scmp.eq.s32.totalorder %s27, 1
      %p129 = por %p127, %p128
      %p130 = scmp.ne.s32.totalorder %s121, %s122
      %p131 = scmp.eq.s32.totalorder %s27, 0
      %p132 = por %p130, %p131
      %p133 = scmp.ne.s32.totalorder %s121, %s122
      %p134 = scmp.eq.s32.totalorder %s28, 1
      %p135 = por %p133, %p134
      %p137 = scmp.ne.s32.totalorder %s122, %s136
      %p138 = scmp.eq.s32.totalorder %s28, 0
      %p139 = por %p137, %p138
      %s140 = ssub.s32 %s22, %s29
      %p141 = scmp.eq.s32.totalorder %s140, 0
      %s143 = sadd.s32 %s142, 1
      %s144 = scalar_select %p141, %s142, %s143
      %p147 = pneg %p141
      %p148 = scmp.eq.s32.totalorder %s22, 1
      %p149 = por %p147, %p148
      %p150 = scmp.ne.s32.totalorder %s142, %s145
      %p151 = scmp.eq.s32.totalorder %s22, 0
      %p152 = por %p150, %p151
      %p153 = scmp.ne.s32.totalorder %s142, %s145
      %p154 = scmp.eq.s32.totalorder %s27, 1
      %p155 = por %p153, %p154
      %p156 = scmp.ne.s32.totalorder %s145, %s146
      %p157 = scmp.eq.s32.totalorder %s27, 0
      %p158 = por %p156, %p157
      %p159 = scmp.ne.s32.totalorder %s145, %s146
      %p160 = scmp.eq.s32.totalorder %s28, 1
      %p161 = por %p159, %p160
      %p163 = scmp.ne.s32.totalorder %s146, %s162
      %p164 = scmp.eq.s32.totalorder %s28, 0
      %p165 = por %p163, %p164
      %s166 = ssub.s32 %s22, %s29
      %p167 = scmp.eq.s32.totalorder %s166, 0
      %s169 = sadd.s32 %s168, 1
      %s170 = scalar_select %p167, %s168, %s169
      %p173 = pneg %p167
      %p174 = scmp.eq.s32.totalorder %s22, 1
      %p175 = por %p173, %p174
      %p176 = scmp.ne.s32.totalorder %s168, %s171
      %p177 = scmp.eq.s32.totalorder %s22, 0
      %p178 = por %p176, %p177
      %p179 = scmp.ne.s32.totalorder %s168, %s171
      %p180 = scmp.eq.s32.totalorder %s27, 1
      %p181 = por %p179, %p180
      %p182 = scmp.ne.s32.totalorder %s171, %s172
      %p183 = scmp.eq.s32.totalorder %s27, 0
      %p184 = por %p182, %p183
      %p185 = scmp.ne.s32.totalorder %s171, %s172
      %p186 = scmp.eq.s32.totalorder %s28, 1
      %p187 = por %p185, %p186
      %p189 = scmp.ne.s32.totalorder %s172, %s188
      %p190 = scmp.eq.s32.totalorder %s28, 0
      %p191 = por %p189, %p190
      %p192 = scmp.le.s32.totalorder 1, %s22
      %p193 = scmp.lt.s32.totalorder %s22, 3
      %p194 = pnand %p192, %p193
      %p195 = pneg %p194
      // Predicated region
      $region9: #{tpu_custom_call.1} parent=5 // pred_check
        _
      $region10: #{tpu_custom_call.1} parent=5 // pred_check_branch
        %197 = sbr.rel (%p194) target = $region12
      $region11: #{tpu_custom_call.1} parent=5 // pred_region
        %s198 = ssub.s32 %s22, 1
        // Predicated region
        $region13: #{tpu_custom_call.1} parent=11 // pred_check
          %p199 = pneg %p69
        $region14: #{tpu_custom_call.1} parent=11 // pred_check_branch
          %201 = sbr.rel (%p199) target = $region16
        $region15: #{tpu_custom_call.1} parent=11 // pred_region
          _
        $region16: #{tpu_custom_call.1} parent=11 // pred_fallthru
          _
        // Predicated region
        $region17: #{tpu_custom_call.1} parent=11 // pred_check
          %p202 = pneg %p90
        $region18: #{tpu_custom_call.1} parent=11 // pred_check_branch
          %204 = sbr.rel (%p202) target = $region20
        $region19: #{tpu_custom_call.1} parent=11 // pred_region
          _
        $region20: #{tpu_custom_call.1} parent=11 // pred_fallthru
          _
        // Predicated region
        $region21: #{tpu_custom_call.1} parent=11 // pred_check
          %p205 = pneg %p111
        $region22: #{tpu_custom_call.1} parent=11 // pred_check_branch
          %207 = sbr.rel (%p205) target = $region24
        $region23: #{tpu_custom_call.1} parent=11 // pred_region
          _
        $region24: #{tpu_custom_call.1} parent=11 // pred_fallthru
          _
        // Predicated region
        $region25: #{tpu_custom_call.1} parent=11 // pred_check
          %p208 = pneg %p132
        $region26: #{tpu_custom_call.1} parent=11 // pred_check_branch
          %210 = sbr.rel (%p208) target = $region28
        $region27: #{tpu_custom_call.1} parent=11 // pred_region
          _
        $region28: #{tpu_custom_call.1} parent=11 // pred_fallthru
          _
      $region12: #{tpu_custom_call.1} parent=5 // pred_fallthru
        _
      %p211 = scmp.lt.s32.totalorder %s22, 2
      // Predicated region
      $region29: #{tpu_custom_call.1} parent=5 // pred_check
        %p212 = pneg %p211
      $region30: #{tpu_custom_call.1} parent=5 // pred_check_branch
        %214 = sbr.rel (%p212) target = $region32
      $region31: #{tpu_custom_call.1} parent=5 // pred_region
        // Predicated region
        $region33: #{tpu_custom_call.1} parent=31 // pred_check
          %p215 = pneg %p42
        $region34: #{tpu_custom_call.1} parent=31 // pred_check_branch
          %217 = sbr.rel (%p215) target = $region36
        $region35: #{tpu_custom_call.1} parent=31 // pred_region
          %s218 = sand.u32 %s32, 1
          %s219 = scalar_lea.sflag [#allocation3], %s218
          %s220 = sand.u32 %s32, 1
          %s221 = smul.addr %s220, 16
          %s222 = scalar_lea.vmem [#allocation2], %s221
          %s224 = ssub.s32 256, 256
          %225 = vsyncadd %s219, %s224
          %s226 = smul.addr %s22, 2
          %s227 = smul.addr %s226, 128
          %s228 = scalar_lea.hbm %s0, %s227
          %s230 = sshll.u32 %s222, 4
          %s231 = int_to_ptr.vmem [resolvable:$true] %s230
          %233 = dma.hbm_to_vmem [thread:$0]  %s228, 256, %s231, %s219
        $region36: #{tpu_custom_call.1} parent=31 // pred_fallthru
          _
      $region32: #{tpu_custom_call.1} parent=5 // pred_fallthru
        _
      %p234 = scmp.le.s32.totalorder 1, %s22
      %p235 = scmp.lt.s32.totalorder %s22, 3
      %p236 = pnand %p234, %p235
      %p237 = pneg %p236
      // Predicated region
      $region37: #{tpu_custom_call.1} parent=5 // pred_check
        _
      $region38: #{tpu_custom_call.1} parent=5 // pred_check_branch
        %239 = sbr.rel (%p236) target = $region40
      $region39: #{tpu_custom_call.1} parent=5 // pred_region
        %s240 = ssub.s32 %s22, 1
        %s241 = sand.u32 %s35, 1
        %s242 = scalar_lea.sflag [#allocation3], %s241
        %s243 = sand.u32 %s35, 1
        %s244 = smul.addr %s243, 16
        %s245 = scalar_lea.vmem [#allocation2], %s244
        // Predicated region
        $region41: #{tpu_custom_call.1} parent=39 // pred_check
          %p246 = pneg %p48
        $region42: #{tpu_custom_call.1} parent=39 // pred_check_branch
          %248 = sbr.rel (%p246) target = $region44
        $region43: #{tpu_custom_call.1} parent=39 // pred_region
          %249 = dma.done %s242, 256
        $region44: #{tpu_custom_call.1} parent=39 // pred_fallthru
          _
        %s250 = sand.u32 %s35, 1
        %s251 = scalar_lea.sflag [#allocation3], %s250
        %s252 = sand.u32 %s35, 1
        %s253 = smul.addr %s252, 16
        %s254 = scalar_lea.vmem [#allocation2], %s253
        %p255 = pneg %p48
        %p256 = pneg %p45
        %p257 = pneg %p69
        %p258 = pneg %p66
        %p259 = pneg %p90
        %p260 = pneg %p87
        %p261 = pneg %p111
        %p262 = pneg %p108
        %p263 = pneg %p132
        %p264 = pneg %p129
        %p265 = pneg %p158
        %p266 = pneg %p155
        %s267 = sand.u32 %s145, 1
        %s268 = scalar_lea.sflag [#allocation4], %s267
        %s269 = sand.u32 %s145, 1
        %s270 = smul.addr %s269, 16
        %s271 = scalar_lea.vmem [#allocation5], %s270
        %p272 = pneg %p184
        %p273 = pneg %p181
        %s274 = sand.u32 %s171, 1
        %s275 = scalar_lea.sflag [#allocation7], %s274
        %s276 = sand.u32 %s171, 1
        %s277 = smul.addr %s276, 16
        %s278 = scalar_lea.vmem [#allocation6], %s277
        %v279 = vld [vmem:[%s245] sm:$0xff]
        %v280 = vld [vmem:[%s245 + $0x8] sm:$0xff]
        %v281 = vld [vmem:[%s1] sm:$0xff]
        %v282 = vld [vmem:[%s2] sm:$0xff]
        %286 = vrot.lane.b32.xlu0 %v279, 127
        %v287 = vpop.permute.xlu0 %286
        %288 = vrot.lane.b32.xlu0 %v280, 127
        %v289 = vpop.permute.xlu0 %288
        %290 = vrot.lane.b32.xlu0 0.0, 127
        %v291 = vpop.permute.xlu0 %290
        %vm292 = vcmask 1039360
        %v293 = vsel %vm292, %v287, %v289
        %v294 = vsel %vm292, %v289, %v291
        %298 = vrot.lane.b32.xlu0 %v279, 126
        %v299 = vpop.permute.xlu0 %298
        %300 = vrot.lane.b32.xlu0 %v280, 126
        %v301 = vpop.permute.xlu0 %300
        %302 = vrot.lane.b32.xlu0 0.0, 126
        %v303 = vpop.permute.xlu0 %302
        %vm304 = vcmask 1031168
        %v305 = vsel %vm304, %v299, %v301
        %v306 = vsel %vm304, %v301, %v303
        %310 = vrot.lane.b32.xlu0 %v279, 112
        %v311 = vpop.permute.xlu0 %310
        %312 = vrot.lane.b32.xlu0 %v280, 112
        %v313 = vpop.permute.xlu0 %312
        %314 = vrot.lane.b32.xlu0 0.0, 112
        %v315 = vpop.permute.xlu0 %314
        %vm316 = vcmask 916480
        %v317 = vsel %vm316, %v311, %v313
        %v318 = vsel %vm316, %v313, %v315
        %322 = vrot.lane.b32.xlu0 %v279, 111
        %v323 = vpop.permute.xlu0 %322
        %324 = vrot.lane.b32.xlu0 %v280, 111
        %v325 = vpop.permute.xlu0 %324
        %326 = vrot.lane.b32.xlu0 0.0, 111
        %v327 = vpop.permute.xlu0 %326
        %vm328 = vcmask 908288
        %v329 = vsel %vm328, %v323, %v325
        %v330 = vsel %vm328, %v325, %v327
        %334 = vrot.lane.b32.xlu0 %v279, 110
        %v335 = vpop.permute.xlu0 %334
        %336 = vrot.lane.b32.xlu0 %v280, 110
        %v337 = vpop.permute.xlu0 %336
        %338 = vrot.lane.b32.xlu0 0.0, 110
        %v339 = vpop.permute.xlu0 %338
        %vm340 = vcmask 900096
        %v341 = vsel %vm340, %v335, %v337
        %v342 = vsel %vm340, %v337, %v339
        %346 = vrot.lane.b32.xlu0 %v279, 96
        %v347 = vpop.permute.xlu0 %346
        %348 = vrot.lane.b32.xlu0 %v280, 96
        %v349 = vpop.permute.xlu0 %348
        %350 = vrot.lane.b32.xlu0 0.0, 96
        %v351 = vpop.permute.xlu0 %350
        %vm352 = vcmask 785408
        %v353 = vsel %vm352, %v347, %v349
        %v354 = vsel %vm352, %v349, %v351
        %358 = vrot.lane.b32.xlu0 %v279, 95
        %v359 = vpop.permute.xlu0 %358
        %360 = vrot.lane.b32.xlu0 %v280, 95
        %v361 = vpop.permute.xlu0 %360
        %362 = vrot.lane.b32.xlu0 0.0, 95
        %v363 = vpop.permute.xlu0 %362
        %vm364 = vcmask 777216
        %v365 = vsel %vm364, %v359, %v361
        %v366 = vsel %vm364, %v361, %v363
        %370 = vrot.lane.b32.xlu0 %v279, 94
        %v371 = vpop.permute.xlu0 %370
        %372 = vrot.lane.b32.xlu0 %v280, 94
        %v373 = vpop.permute.xlu0 %372
        %374 = vrot.lane.b32.xlu0 0.0, 94
        %v375 = vpop.permute.xlu0 %374
        %vm376 = vcmask 769024
        %v377 = vsel %vm376, %v371, %v373
        %v378 = vsel %vm376, %v373, %v375
        %383 = vset.pattern.permute.xlu0 0
        %384 = vperm.xlu0 %383, %v282
        %v385 = vpop.permute.xlu0 %384
        %vm387 = vcmask 588800
        %v389 = vsel %vm387, %v281, 0
        %391 = vmatprep.subr.mxu0 0.0
        %392 = vmatpush1.msra.mxu0 0.0
        %393 = vmatprep.subr.mxu0 0.0
        %394 = vmatpush1.msra.mxu0 0.0
        %395 = vmatprep.subr.mxu0 0.0
        %396 = vmatpush1.msra.mxu0 0.0
        %397 = vmatprep.subr.mxu0 0.0
        %398 = vmatpush1.msra.mxu0 0.0
        %399 = vmatprep.subr.mxu0 0.0
        %400 = vmatpush1.msra.mxu0 0.0
        %401 = vmatprep.subr.mxu0 0.0
        %402 = vmatpush1.msra.mxu0 0.0
        %403 = vmatprep.subr.mxu0 0.0
        %404 = vmatpush1.msra.mxu0 0.0
        %405 = vmatprep.subr.mxu0 %v378
        %406 = vmatpush1.msra.mxu0 %v377
        %407 = vmatprep.subr.mxu0 %v366
        %408 = vmatpush1.msra.mxu0 %v365
        %409 = vmatprep.subr.mxu0 %v354
        %410 = vmatpush1.msra.mxu0 %v353
        %411 = vmatprep.subr.mxu0 %v342
        %412 = vmatpush1.msra.mxu0 %v341
        %413 = vmatprep.subr.mxu0 %v330
        %414 = vmatpush1.msra.mxu0 %v329
        %415 = vmatprep.subr.mxu0 %v318
        %416 = vmatpush1.msra.mxu0 %v317
        %417 = vmatprep.subr.mxu0 %v306
        %418 = vmatpush1.msra.mxu0 %v305
        %419 = vmatprep.subr.mxu0 %v294
        %420 = vmatpush1.msra.mxu0 %v293
        %421 = vmatprep.subr.mxu0 %v280
        %422 = vmatpush1.msra.mxu0 %v279
        %423 = vmatprep.subr.mxu0 0.0
        %424 = vmatpush2.msra.mxu0 0.0
        %425 = vmatprep.subr.mxu0 0.0
        %426 = vmatpush2.msra.mxu0 0.0
        %427 = vmatprep.subr.mxu0 0.0
        %428 = vmatpush2.msra.mxu0 0.0
        %429 = vmatprep.subr.mxu0 0.0
        %430 = vmatpush2.msra.mxu0 0.0
        %431 = vmatprep.subr.mxu0 0.0
        %432 = vmatpush2.msra.mxu0 0.0
        %433 = vmatprep.subr.mxu0 0.0
        %434 = vmatpush2.msra.mxu0 0.0
        %435 = vmatprep.subr.mxu0 0.0
        %436 = vmatpush2.msra.mxu0 0.0
        %437 = vmatprep.subr.mxu0 0.0
        %438 = vmatpush2.msra.mxu0 0.0
        %439 = vmatprep.subr.mxu0 0.0
        %440 = vmatpush2.msra.mxu0 0.0
        %441 = vmatprep.subr.mxu0 0.0
        %442 = vmatpush2.msra.mxu0 0.0
        %443 = vmatprep.subr.mxu0 0.0
        %444 = vmatpush2.msra.mxu0 0.0
        %445 = vmatprep.subr.mxu0 0.0
        %446 = vmatpush2.msra.mxu0 0.0
        %447 = vmatprep.subr.mxu0 0.0
        %448 = vmatpush2.msra.mxu0 0.0
        %449 = vmatprep.subr.mxu0 0.0
        %450 = vmatpush2.msra.mxu0 0.0
        %451 = vmatprep.subr.mxu0 0.0
        %452 = vmatpush2.msra.mxu0 0.0
        %453 = vmatprep.subr.mxu0 0.0
        %454 = vmatpush2.msra.mxu0 0.0
        %455 = vmatprep.mubr.f32.mxu0 0.0
        %456 = vmatmul.mubr.f32.gmra.mxu0 %v389
        %v457 = vpop.f32.mrf.mxu0
        %v458 = vadd.f32 %v385, %v457
        %v459 = vpop.f32.mrf.mxu0
        %v460 = vadd.f32 %v385, %v459
        %461 = vdwg.mxu0
        %462 = vmatprep.subr.mxu0 0.0
        %463 = vmatpush1.msra.mxu0 0.0
        %464 = vmatprep.subr.mxu0 0.0
        %465 = vmatpush1.msra.mxu0 0.0
        %466 = vmatprep.subr.mxu0 0.0
        %467 = vmatpush1.msra.mxu0 0.0
        %468 = vmatprep.subr.mxu0 0.0
        %469 = vmatpush1.msra.mxu0 0.0
        %470 = vmatprep.subr.mxu0 0.0
        %471 = vmatpush1.msra.mxu0 0.0
        %472 = vmatprep.subr.mxu0 0.0
        %473 = vmatpush1.msra.mxu0 0.0
        %474 = vmatprep.subr.mxu0 0.0
        %475 = vmatpush1.msra.mxu0 0.0
        %476 = vmatprep.subr.mxu0 0.0
        %477 = vmatpush1.msra.mxu0 %v375
        %478 = vmatprep.subr.mxu0 0.0
        %479 = vmatpush1.msra.mxu0 %v363
        %480 = vmatprep.subr.mxu0 0.0
        %481 = vmatpush1.msra.mxu0 %v351
        %482 = vmatprep.subr.mxu0 0.0
        %483 = vmatpush1.msra.mxu0 %v339
        %484 = vmatprep.subr.mxu0 0.0
        %485 = vmatpush1.msra.mxu0 %v327
        %486 = vmatprep.subr.mxu0 0.0
        %487 = vmatpush1.msra.mxu0 %v315
        %488 = vmatprep.subr.mxu0 0.0
        %489 = vmatpush1.msra.mxu0 %v303
        %490 = vmatprep.subr.mxu0 0.0
        %491 = vmatpush1.msra.mxu0 %v291
        %492 = vmatprep.subr.mxu0 0.0
        %493 = vmatpush1.msra.mxu0 0.0
        %494 = vmatprep.subr.mxu0 0.0
        %495 = vmatpush2.msra.mxu0 0.0
        %496 = vmatprep.subr.mxu0 0.0
        %497 = vmatpush2.msra.mxu0 0.0
        %498 = vmatprep.subr.mxu0 0.0
        %499 = vmatpush2.msra.mxu0 0.0
        %500 = vmatprep.subr.mxu0 0.0
        %501 = vmatpush2.msra.mxu0 0.0
        %502 = vmatprep.subr.mxu0 0.0
        %503 = vmatpush2.msra.mxu0 0.0
        %504 = vmatprep.subr.mxu0 0.0
        %505 = vmatpush2.msra.mxu0 0.0
        %506 = vmatprep.subr.mxu0 0.0
        %507 = vmatpush2.msra.mxu0 0.0
        %508 = vmatprep.subr.mxu0 0.0
        %509 = vmatpush2.msra.mxu0 0.0
        %510 = vmatprep.subr.mxu0 0.0
        %511 = vmatpush2.msra.mxu0 0.0
        %512 = vmatprep.subr.mxu0 0.0
        %513 = vmatpush2.msra.mxu0 0.0
        %514 = vmatprep.subr.mxu0 0.0
        %515 = vmatpush2.msra.mxu0 0.0
        %516 = vmatprep.subr.mxu0 0.0
        %517 = vmatpush2.msra.mxu0 0.0
        %518 = vmatprep.subr.mxu0 0.0
        %519 = vmatpush2.msra.mxu0 0.0
        %520 = vmatprep.subr.mxu0 0.0
        %521 = vmatpush2.msra.mxu0 0.0
        %522 = vmatprep.subr.mxu0 0.0
        %523 = vmatpush2.msra.mxu0 0.0
        %524 = vmatprep.subr.mxu0 0.0
        %525 = vmatpush2.msra.mxu0 0.0
        %526 = vmatprep.mubr.f32.mxu0 0.0
        %527 = vmatmul.mubr.f32.gmra.mxu0 %v389
        %v528 = vpop.f32.mrf.mxu0
        %v529 = vadd.f32 %v385, %v528
        %v530 = vpop.f32.mrf.mxu0
        %531 = vdwg.mxu0
        %v532 = vmax.f32 %v458, 0.0
        %v533 = vmax.f32 %v460, 0.0
        %v534 = vmax.f32 %v529, 0.0
        %v535 = vld [vmem:[%s3] sm:$0xff]
        %v536 = vld [vmem:[%s4] sm:$0xff]
        %540 = vrot.lane.b32.xlu0 %v532, 127
        %v541 = vpop.permute.xlu0 %540
        %542 = vrot.lane.b32.xlu0 %v533, 127
        %v543 = vpop.permute.xlu0 %542
        %544 = vrot.lane.b32.xlu0 %v534, 127
        %v545 = vpop.permute.xlu0 %544
        %v546 = vsel %vm292, %v541, %v543
        %v547 = vsel %vm292, %v543, %v545
        %551 = vrot.lane.b32.xlu0 %v532, 126
        %v552 = vpop.permute.xlu0 %551
        %553 = vrot.lane.b32.xlu0 %v533, 126
        %v554 = vpop.permute.xlu0 %553
        %555 = vrot.lane.b32.xlu0 %v534, 126
        %v556 = vpop.permute.xlu0 %555
        %v557 = vsel %vm304, %v552, %v554
        %v558 = vsel %vm304, %v554, %v556
        %562 = vrot.lane.b32.xlu0 %v532, 112
        %v563 = vpop.permute.xlu0 %562
        %564 = vrot.lane.b32.xlu0 %v533, 112
        %v565 = vpop.permute.xlu0 %564
        %566 = vrot.lane.b32.xlu0 %v534, 112
        %v567 = vpop.permute.xlu0 %566
        %v568 = vsel %vm316, %v563, %v565
        %v569 = vsel %vm316, %v565, %v567
        %573 = vrot.lane.b32.xlu0 %v532, 111
        %v574 = vpop.permute.xlu0 %573
        %575 = vrot.lane.b32.xlu0 %v533, 111
        %v576 = vpop.permute.xlu0 %575
        %577 = vrot.lane.b32.xlu0 %v534, 111
        %v578 = vpop.permute.xlu0 %577
        %v579 = vsel %vm328, %v574, %v576
        %v580 = vsel %vm328, %v576, %v578
        %584 = vrot.lane.b32.xlu0 %v532, 110
        %v585 = vpop.permute.xlu0 %584
        %586 = vrot.lane.b32.xlu0 %v533, 110
        %v587 = vpop.permute.xlu0 %586
        %588 = vrot.lane.b32.xlu0 %v534, 110
        %v589 = vpop.permute.xlu0 %588
        %v590 = vsel %vm340, %v585, %v587
        %v591 = vsel %vm340, %v587, %v589
        %595 = vrot.lane.b32.xlu0 %v532, 96
        %v596 = vpop.permute.xlu0 %595
        %597 = vrot.lane.b32.xlu0 %v533, 96
        %v598 = vpop.permute.xlu0 %597
        %599 = vrot.lane.b32.xlu0 %v534, 96
        %v600 = vpop.permute.xlu0 %599
        %v601 = vsel %vm352, %v596, %v598
        %v602 = vsel %vm352, %v598, %v600
        %606 = vrot.lane.b32.xlu0 %v532, 95
        %v607 = vpop.permute.xlu0 %606
        %608 = vrot.lane.b32.xlu0 %v533, 95
        %v609 = vpop.permute.xlu0 %608
        %610 = vrot.lane.b32.xlu0 %v534, 95
        %v611 = vpop.permute.xlu0 %610
        %v612 = vsel %vm364, %v607, %v609
        %v613 = vsel %vm364, %v609, %v611
        %617 = vrot.lane.b32.xlu0 %v532, 94
        %v618 = vpop.permute.xlu0 %617
        %619 = vrot.lane.b32.xlu0 %v533, 94
        %v620 = vpop.permute.xlu0 %619
        %621 = vrot.lane.b32.xlu0 %v534, 94
        %v622 = vpop.permute.xlu0 %621
        %v623 = vsel %vm376, %v618, %v620
        %v624 = vsel %vm376, %v620, %v622
        %629 = vset.pattern.permute.xlu0 0
        %630 = vperm.xlu0 %629, %v536
        %v631 = vpop.permute.xlu0 %630
        %v634 = vsel %vm387, %v535, 0
        %636 = vmatprep.subr.mxu0 0.0
        %637 = vmatpush1.msra.mxu0 0.0
        %638 = vmatprep.subr.mxu0 0.0
        %639 = vmatpush1.msra.mxu0 0.0
        %640 = vmatprep.subr.mxu0 0.0
        %641 = vmatpush1.msra.mxu0 0.0
        %642 = vmatprep.subr.mxu0 0.0
        %643 = vmatpush1.msra.mxu0 0.0
        %644 = vmatprep.subr.mxu0 0.0
        %645 = vmatpush1.msra.mxu0 0.0
        %646 = vmatprep.subr.mxu0 0.0
        %647 = vmatpush1.msra.mxu0 0.0
        %648 = vmatprep.subr.mxu0 0.0
        %649 = vmatpush1.msra.mxu0 0.0
        %650 = vmatprep.subr.mxu0 %v624
        %651 = vmatpush1.msra.mxu0 %v623
        %652 = vmatprep.subr.mxu0 %v613
        %653 = vmatpush1.msra.mxu0 %v612
        %654 = vmatprep.subr.mxu0 %v602
        %655 = vmatpush1.msra.mxu0 %v601
        %656 = vmatprep.subr.mxu0 %v591
        %657 = vmatpush1.msra.mxu0 %v590
        %658 = vmatprep.subr.mxu0 %v580
        %659 = vmatpush1.msra.mxu0 %v579
        %660 = vmatprep.subr.mxu0 %v569
        %661 = vmatpush1.msra.mxu0 %v568
        %662 = vmatprep.subr.mxu0 %v558
        %663 = vmatpush1.msra.mxu0 %v557
        %664 = vmatprep.subr.mxu0 %v547
        %665 = vmatpush1.msra.mxu0 %v546
        %666 = vmatprep.subr.mxu0 %v533
        %667 = vmatpush1.msra.mxu0 %v532
        %668 = vmatprep.subr.mxu0 0.0
        %669 = vmatpush2.msra.mxu0 0.0
        %670 = vmatprep.subr.mxu0 0.0
        %671 = vmatpush2.msra.mxu0 0.0
        %672 = vmatprep.subr.mxu0 0.0
        %673 = vmatpush2.msra.mxu0 0.0
        %674 = vmatprep.subr.mxu0 0.0
        %675 = vmatpush2.msra.mxu0 0.0
        %676 = vmatprep.subr.mxu0 0.0
        %677 = vmatpush2.msra.mxu0 0.0
        %678 = vmatprep.subr.mxu0 0.0
        %679 = vmatpush2.msra.mxu0 0.0
        %680 = vmatprep.subr.mxu0 0.0
        %681 = vmatpush2.msra.mxu0 0.0
        %682 = vmatprep.subr.mxu0 0.0
        %683 = vmatpush2.msra.mxu0 0.0
        %684 = vmatprep.subr.mxu0 0.0
        %685 = vmatpush2.msra.mxu0 0.0
        %686 = vmatprep.subr.mxu0 0.0
        %687 = vmatpush2.msra.mxu0 0.0
        %688 = vmatprep.subr.mxu0 0.0
        %689 = vmatpush2.msra.mxu0 0.0
        %690 = vmatprep.subr.mxu0 0.0
        %691 = vmatpush2.msra.mxu0 0.0
        %692 = vmatprep.subr.mxu0 0.0
        %693 = vmatpush2.msra.mxu0 0.0
        %694 = vmatprep.subr.mxu0 0.0
        %695 = vmatpush2.msra.mxu0 0.0
        %696 = vmatprep.subr.mxu0 0.0
        %697 = vmatpush2.msra.mxu0 0.0
        %698 = vmatprep.subr.mxu0 0.0
        %699 = vmatpush2.msra.mxu0 0.0
        %700 = vmatprep.mubr.f32.mxu0 0.0
        %701 = vmatmul.mubr.f32.gmra.mxu0 %v634
        %v702 = vpop.f32.mrf.mxu0
        %v703 = vadd.f32 %v631, %v702
        %v704 = vpop.f32.mrf.mxu0
        %v705 = vadd.f32 %v631, %v704
        %706 = vdwg.mxu0
        %707 = vmatprep.subr.mxu0 0.0
        %708 = vmatpush1.msra.mxu0 0.0
        %709 = vmatprep.subr.mxu0 0.0
        %710 = vmatpush1.msra.mxu0 0.0
        %711 = vmatprep.subr.mxu0 0.0
        %712 = vmatpush1.msra.mxu0 0.0
        %713 = vmatprep.subr.mxu0 0.0
        %714 = vmatpush1.msra.mxu0 0.0
        %715 = vmatprep.subr.mxu0 0.0
        %716 = vmatpush1.msra.mxu0 0.0
        %717 = vmatprep.subr.mxu0 0.0
        %718 = vmatpush1.msra.mxu0 0.0
        %719 = vmatprep.subr.mxu0 0.0
        %720 = vmatpush1.msra.mxu0 0.0
        %721 = vmatprep.subr.mxu0 0.0
        %722 = vmatpush1.msra.mxu0 %v622
        %723 = vmatprep.subr.mxu0 0.0
        %724 = vmatpush1.msra.mxu0 %v611
        %725 = vmatprep.subr.mxu0 0.0
        %726 = vmatpush1.msra.mxu0 %v600
        %727 = vmatprep.subr.mxu0 0.0
        %728 = vmatpush1.msra.mxu0 %v589
        %729 = vmatprep.subr.mxu0 0.0
        %730 = vmatpush1.msra.mxu0 %v578
        %731 = vmatprep.subr.mxu0 0.0
        %732 = vmatpush1.msra.mxu0 %v567
        %733 = vmatprep.subr.mxu0 0.0
        %734 = vmatpush1.msra.mxu0 %v556
        %735 = vmatprep.subr.mxu0 0.0
        %736 = vmatpush1.msra.mxu0 %v545
        %737 = vmatprep.subr.mxu0 0.0
        %738 = vmatpush1.msra.mxu0 %v534
        %739 = vmatprep.subr.mxu0 0.0
        %740 = vmatpush2.msra.mxu0 0.0
        %741 = vmatprep.subr.mxu0 0.0
        %742 = vmatpush2.msra.mxu0 0.0
        %743 = vmatprep.subr.mxu0 0.0
        %744 = vmatpush2.msra.mxu0 0.0
        %745 = vmatprep.subr.mxu0 0.0
        %746 = vmatpush2.msra.mxu0 0.0
        %747 = vmatprep.subr.mxu0 0.0
        %748 = vmatpush2.msra.mxu0 0.0
        %749 = vmatprep.subr.mxu0 0.0
        %750 = vmatpush2.msra.mxu0 0.0
        %751 = vmatprep.subr.mxu0 0.0
        %752 = vmatpush2.msra.mxu0 0.0
        %753 = vmatprep.subr.mxu0 0.0
        %754 = vmatpush2.msra.mxu0 0.0
        %755 = vmatprep.subr.mxu0 0.0
        %756 = vmatpush2.msra.mxu0 0.0
        %757 = vmatprep.subr.mxu0 0.0
        %758 = vmatpush2.msra.mxu0 0.0
        %759 = vmatprep.subr.mxu0 0.0
        %760 = vmatpush2.msra.mxu0 0.0
        %761 = vmatprep.subr.mxu0 0.0
        %762 = vmatpush2.msra.mxu0 0.0
        %763 = vmatprep.subr.mxu0 0.0
        %764 = vmatpush2.msra.mxu0 0.0
        %765 = vmatprep.subr.mxu0 0.0
        %766 = vmatpush2.msra.mxu0 0.0
        %767 = vmatprep.subr.mxu0 0.0
        %768 = vmatpush2.msra.mxu0 0.0
        %769 = vmatprep.subr.mxu0 0.0
        %770 = vmatpush2.msra.mxu0 0.0
        %771 = vmatprep.mubr.f32.mxu0 0.0
        %772 = vmatmul.mubr.f32.gmra.mxu0 %v634
        %v773 = vpop.f32.mrf.mxu0
        %v774 = vadd.f32 %v631, %v773
        %v775 = vpop.f32.mrf.mxu0
        %776 = vdwg.mxu0
        %v777 = vmax.f32 %v703, 0.0
        %v778 = vmax.f32 %v705, 0.0
        %v779 = vmax.f32 %v774, 0.0
        %780 = vst [vmem:[%s271] sm:$0xff] %v777
        %781 = vst [vmem:[%s271 + $0x8] sm:$0xff] %v778
        %785 = vrot.lane.b32.xlu0 %v777, 127
        %v786 = vpop.permute.xlu0 %785
        %787 = vrot.lane.b32.xlu0 %v778, 127
        %v788 = vpop.permute.xlu0 %787
        %789 = vrot.lane.b32.xlu0 %v779, 127
        %v790 = vpop.permute.xlu0 %789
        %v791 = vsel %vm292, %v786, %v788
        %v792 = vsel %vm292, %v788, %v790
        %v795 = vmax.f32 %v777, %v791
        %v796 = vmax.f32 %v778, %v792
        %v798 = vmax.f32 %v779, %v790
        %802 = vrot.lane.b32.xlu0 %v795, 112
        %v803 = vpop.permute.xlu0 %802
        %804 = vrot.lane.b32.xlu0 %v796, 112
        %v805 = vpop.permute.xlu0 %804
        %806 = vrot.lane.b32.xlu0 %v798, 112
        %v807 = vpop.permute.xlu0 %806
        %v808 = vsel %vm316, %v803, %v805
        %v809 = vsel %vm316, %v805, %v807
        %v812 = vmax.f32 %v795, %v808
        %v813 = vmax.f32 %v796, %v809
        %814 = vst [vmem:[%s278] sm:$0xff] %v812
        %815 = vst [vmem:[%s278 + $0x8] sm:$0xff] %v813
        %s816 = sand.u32 %s145, 1
        %s817 = scalar_lea.sflag [#allocation4], %s816
        %s818 = sand.u32 %s145, 1
        %s819 = smul.addr %s818, 16
        %s820 = scalar_lea.vmem [#allocation5], %s819
        %s821 = sand.u32 %s171, 1
        %s822 = scalar_lea.sflag [#allocation7], %s821
        %s823 = sand.u32 %s171, 1
        %s824 = smul.addr %s823, 16
        %s825 = scalar_lea.vmem [#allocation6], %s824
        // Predicated region
        $region45: #{tpu_custom_call.1} parent=39 // pred_check
          %p826 = pneg %p155
        $region46: #{tpu_custom_call.1} parent=39 // pred_check_branch
          %828 = sbr.rel (%p826) target = $region48
        $region47: #{tpu_custom_call.1} parent=39 // pred_region
          %s830 = ssub.s32 256, 256
          %831 = vsyncadd %s817, %s830
          %s832 = smul.addr %s27, 2
          %s833 = smul.addr %s832, 128
          %s834 = scalar_lea.hbm %s5, %s833
          %s836 = sshll.u32 %s820, 4
          %s837 = int_to_ptr.vmem [resolvable:$true] %s836
          %839 = dma.vmem_to_hbm [thread:$0]  %s837, 256, %s834, %s817
        $region48: #{tpu_custom_call.1} parent=39 // pred_fallthru
          _
        // Predicated region
        $region49: #{tpu_custom_call.1} parent=39 // pred_check
          %p840 = pneg %p181
        $region50: #{tpu_custom_call.1} parent=39 // pred_check_branch
          %842 = sbr.rel (%p840) target = $region52
        $region51: #{tpu_custom_call.1} parent=39 // pred_region
          %s844 = ssub.s32 256, 256
          %845 = vsyncadd %s822, %s844
          %s846 = smul.addr %s27, 2
          %s847 = smul.addr %s846, 128
          %s848 = scalar_lea.hbm %s6, %s847
          %s850 = sshll.u32 %s825, 4
          %s851 = int_to_ptr.vmem [resolvable:$true] %s850
          %853 = dma.vmem_to_hbm [thread:$0]  %s851, 256, %s848, %s822
        $region52: #{tpu_custom_call.1} parent=39 // pred_fallthru
          _
      $region40: #{tpu_custom_call.1} parent=5 // pred_fallthru
        _
      %p854 = scmp.le.s32.totalorder 2, %s22
      // Predicated region
      $region53: #{tpu_custom_call.1} parent=5 // pred_check
        %p855 = pneg %p854
      $region54: #{tpu_custom_call.1} parent=5 // pred_check_branch
        %857 = sbr.rel (%p855) target = $region56
      $region55: #{tpu_custom_call.1} parent=5 // pred_region
        %s858 = ssub.s32 %s22, 2
        // Predicated region
        $region57: #{tpu_custom_call.1} parent=55 // pred_check
          %p859 = pneg %p161
        $region58: #{tpu_custom_call.1} parent=55 // pred_check_branch
          %861 = sbr.rel (%p859) target = $region60
        $region59: #{tpu_custom_call.1} parent=55 // pred_region
          %s862 = sand.u32 %s146, 1
          %s863 = scalar_lea.sflag [#allocation4], %s862
          %s864 = sand.u32 %s146, 1
          %s865 = smul.addr %s864, 16
          %s866 = scalar_lea.vmem [#allocation5], %s865
          %867 = dma.done %s863, 256
        $region60: #{tpu_custom_call.1} parent=55 // pred_fallthru
          _
        // Predicated region
        $region61: #{tpu_custom_call.1} parent=55 // pred_check
          %p868 = pneg %p187
        $region62: #{tpu_custom_call.1} parent=55 // pred_check_branch
          %870 = sbr.rel (%p868) target = $region64
        $region63: #{tpu_custom_call.1} parent=55 // pred_region
          %s871 = sand.u32 %s172, 1
          %s872 = scalar_lea.sflag [#allocation7], %s871
          %s873 = sand.u32 %s172, 1
          %s874 = smul.addr %s873, 16
          %s875 = scalar_lea.vmem [#allocation6], %s874
          %876 = dma.done %s872, 256
        $region64: #{tpu_custom_call.1} parent=55 // pred_fallthru
          _
      $region56: #{tpu_custom_call.1} parent=5 // pred_fallthru
        _
    $region6: #{tpu_custom_call.1} parent=1 // loop_footer
      %s26 = sadd.s32 1, %s22
    $region7: #{tpu_custom_call.1} parent=1 // loop_footer_branch
      %21 = sbr.rel target = $region3
    $region8: #{tpu_custom_call.1} parent=1 // loop_exit
      _
    %877 = vsyncpa [#allocation3], 1
    %s878 = scalar_lea.sflag [#allocation3], 1
    %879 = vsyncpa %s878, 1
    %880 = vsyncpa [#allocation4], 1
    %s881 = scalar_lea.sflag [#allocation4], 1
    %882 = vsyncpa %s881, 1
    %883 = vsyncpa [#allocation7], 1
    %s884 = scalar_lea.sflag [#allocation7], 1
    %885 = vsyncpa %s884, 1

</llo_original>
